<compile_context>
chip_gen: v6e
topology: v6e:2x2x1
jax: 0.10.0
libtpu: 0.0.40
codegen_flags: <defaults>
</compile_context>

<pallas_src>
import numpy as np
import jax
import jax.numpy as jnp
from jax.experimental import pallas as pl
from jax.experimental.pallas import tpu as pltpu


def make_kernel_np(k, upsample_factor=1):
    """Deterministic port of stylegan2.make_kernel (numpy, no checkpoints)."""
    k = np.asarray(k, dtype=np.float32)
    if k.ndim == 1:
        k = k[None, :] * k[:, None]
    k = k / k.sum()
    if upsample_factor > 1:
        k = k * (upsample_factor ** 2)
    return k


def _vmem_budgets():
    """(per-buffer block byte budget, vmem_limit_bytes), generation-aware."""
    vmem_cap = 64 * 1024 * 1024                  # conservative default: v7x per-TC
    try:
        vmem_cap = int(pltpu.get_tpu_info().vmem_capacity_bytes)
    except Exception:
        pass
    if vmem_cap >= 100 * 1024 * 1024:            # v5e / v6e: 128 MiB physical VMEM
        return 6 << 20, 64 << 20
    return 3 << 20, 48 << 20                     # v7x: 64 MiB per TensorCore


def _pick_tile_nc(nc, plane_bytes, target_bytes):
    """Planes per grid block.

    Largest plane count whose f32 working block fits `target_bytes`, capped at
    ceil(nc/2) so the grid has >= 2 steps (v7x 2-TensorCore split), preferring
    an exact divisor of nc so the last block is not ragged."""
    max_fit = max(1, int(target_bytes // max(plane_bytes, 1)))
    if nc >= 2:
        max_fit = min(max_fit, -(-nc // 2))      # ceil(nc / 2)
    max_fit = min(max_fit, nc)
    for t in range(max_fit, 0, -1):
        if nc % t == 0:
            return t
    return max_fit


def _fir_1d(x, taps, axis, out_len):
    """1-D FIR along `axis` (1 = H/sublane, 2 = W/lane): sum_t taps[t]*x[t:t+out_len].

    Static Python-float taps; symmetric kernels use tap pairing (half the muls)."""
    L = len(taps)

    def sl(t):
        if axis == 1:
            return x[:, t:t + out_len, :]
        return x[:, :, t:t + out_len]

    symmetric = L > 1 and all(
        abs(taps[i] - taps[L - 1 - i]) <= 1e-12 for i in range(L // 2))
    if symmetric:
        acc = None
        for i in range(L // 2):
            term = taps[i] * (sl(i) + sl(L - 1 - i))
            acc = term if acc is None else acc + term
        if L % 2 == 1:
            acc = acc + taps[L // 2] * sl(L // 2)
        return acc
    acc = taps[0] * sl(0)
    for t in range(1, L):
        acc = acc + taps[t] * sl(t)
    return acc


def _build_blur_kernel(*, h_eff, w_eff, h_pad, w_pad, h_out, w_out,
                       p_top, p_left, crop_h, crop_w,
                       kx_taps, ky_taps, taps_2d):
    """Per-block kernel. Separable path when kx/ky are given, else generic 2-D taps."""
    p_bot = h_pad - h_eff - p_top
    p_right = w_pad - w_eff - p_left

    def kernel(x_ref, o_ref, tmp_ref):
        nc_t = x_ref.shape[0]

        # ---- load (possibly cropped) input block, f32 accumulation ----
        full = (crop_h == 0 and crop_w == 0 and
                h_eff == x_ref.shape[1] and w_eff == x_ref.shape[2])
        x = (x_ref[...] if full
             else x_ref[:, crop_h:crop_h + h_eff, crop_w:crop_w + w_eff])
        x = x.astype(jnp.float32)

        if taps_2d is None:
            # ---- separable FIR ----
            # Horizontal (lane-axis) pass straight from the input block; the zero
            # W-halo is fused via an in-register concat (no scratch round trip).
            parts = []
            if p_left > 0:
                parts.append(jnp.zeros((nc_t, h_eff, p_left), jnp.float32))
            parts.append(x)
            if p_right > 0:
                parts.append(jnp.zeros((nc_t, h_eff, p_right), jnp.float32))
            xz = jnp.concatenate(parts, axis=2) if len(parts) > 1 else x

            tmp_h = _fir_1d(xz, kx_taps, axis=2, out_len=w_out)

            # Explicit VMEM scratch holds the horizontal result + zero H-halo rows.
            if p_top > 0:
                tmp_ref[:, :p_top, :] = jnp.zeros((nc_t, p_top, w_out), jnp.float32)
            if p_bot > 0:
                tmp_ref[:, p_top + h_eff:, :] = jnp.zeros((nc_t, p_bot, w_out),
                                                          jnp.float32)
            tmp_ref[:, p_top:p_top + h_eff, :] = tmp_h

            # Vertical (sublane-axis) pass.
            acc = _fir_1d(tmp_ref[...], ky_taps, axis=1, out_len=h_out)
        else:
            # ---- generic (non-separable) 2-D kernel: fully padded scratch ----
            if p_top > 0:
                tmp_ref[:, :p_top, :] = jnp.zeros((nc_t, p_top, w_pad), jnp.float32)
            if p_bot > 0:
                tmp_ref[:, p_top + h_eff:, :] = jnp.zeros((nc_t, p_bot, w_pad),
                                                          jnp.float32)
            if p_left > 0:
                tmp_ref[:, :, :p_left] = jnp.zeros((nc_t, h_pad, p_left), jnp.float32)
            if p_right > 0:
                tmp_ref[:, :, p_left + w_eff:] = jnp.zeros((nc_t, h_pad, p_right),
                                                           jnp.float32)
            tmp_ref[:, p_top:p_top + h_eff, p_left:p_left + w_eff] = x
            b = tmp_ref[...]
            p0, q0, w0 = taps_2d[0]
            acc = w0 * b[:, p0:p0 + h_out, q0:q0 + w_out]
            for (p, q, wt) in taps_2d[1:]:
                acc = acc + wt * b[:, p:p + h_out, q:q + w_out]

        o_ref[...] = acc.astype(o_ref.dtype)

    return kernel


def blur_pallas(x, kernel_1d=(1, 3, 3, 1), pad=(2, 1), upsample_factor=1):
    """Pallas implementation of Blur.forward for NCHW input (up = down = 1)."""
    n, c, h, w = x.shape
    pad0, pad1 = int(pad[0]), int(pad[1])

    # ---- static tap weights (flipped, normalized, upsample-scaled) ----
    k_arr = np.asarray(kernel_1d, dtype=np.float32)
    if k_arr.ndim == 1:
        # Separable: make_kernel's outer-product normalization factors as k/sum(k).
        kn = (k_arr / k_arr.sum())[::-1].copy()           # flipped 1-D factor
        kh = kw = kn.shape[0]
        up2 = float(upsample_factor ** 2) if upsample_factor > 1 else 1.0
        ky_taps = [float(v * up2) for v in kn]             # fold up**2 into one pass
        kx_taps = [float(v) for v in kn]
        taps_2d = None
    else:
        k2d = make_kernel_np(k_arr, upsample_factor)
        kh, kw = k2d.shape
        kflip = k2d[::-1, ::-1]
        taps_2d = [(p, q, float(kflip[p, q])) for p in range(kh) for q in range(kw)]
        kx_taps = ky_taps = None

    # ---- pad geometry (same (pad0, pad1) on H and W; negative pad = crop) ----
    p_lo, p_hi = max(pad0, 0), max(pad1, 0)
    c_lo, c_hi = max(-pad0, 0), max(-pad1, 0)
    h_eff, w_eff = h - c_lo - c_hi, w - c_lo - c_hi
    h_pad, w_pad = h_eff + p_lo + p_hi, w_eff + p_lo + p_hi
    h_out, w_out = h_pad - kh + 1, w_pad - kw + 1
    if min(h_eff, w_eff, h_out, w_out) <= 0:
        raise ValueError(
            f"degenerate blur geometry: h_eff={h_eff} w_eff={w_eff} "
            f"h_out={h_out} w_out={w_out}")

    # ---- NCHW stays put: (N, C, H, W) -> (N*C, H, W) is a free reshape ----
    nc = n * c
    x_flat = x.reshape(nc, h, w)

    target_bytes, vmem_limit = _vmem_budgets()
    plane_bytes = 4 * max(h * w, h_pad * w_pad)            # f32 working set / plane
    nc_tile = _pick_tile_nc(nc, plane_bytes, target_bytes)
    num_tiles = pl.cdiv(nc, nc_tile)

    tmp_shape = ((nc_tile, h_pad, w_out) if taps_2d is None
                 else (nc_tile, h_pad, w_pad))

    kernel = _build_blur_kernel(
        h_eff=h_eff, w_eff=w_eff, h_pad=h_pad, w_pad=w_pad,
        h_out=h_out, w_out=w_out, p_top=p_lo, p_left=p_lo,
        crop_h=c_lo, crop_w=c_lo,
        kx_taps=kx_taps, ky_taps=ky_taps, taps_2d=taps_2d)

    out_flat = pl.pallas_call(
        kernel,
        out_shape=jax.ShapeDtypeStruct((nc, h_out, w_out), x.dtype),
        grid=(num_tiles,),
        in_specs=[pl.BlockSpec((nc_tile, h, w), lambda i: (i, 0, 0))],
        out_specs=pl.BlockSpec((nc_tile, h_out, w_out), lambda i: (i, 0, 0)),
        scratch_shapes=[pltpu.VMEM(tmp_shape, jnp.float32)],
        compiler_params=pltpu.CompilerParams(
            dimension_semantics=("parallel",),
            vmem_limit_bytes=vmem_limit),
    )(x_flat)

    return out_flat.reshape(n, c, h_out, w_out)


def blur_reference(x, kernel_1d=(1, 3, 3, 1), pad=(2, 1), upsample_factor=1):
    """Pure-JAX reference (depthwise correlation with flipped kernel)."""
    n, c, h, w = x.shape
    k2d = jnp.asarray(make_kernel_np(kernel_1d, upsample_factor))
    kh, kw = k2d.shape
    k_flip = jnp.flip(k2d, (0, 1))
    weight = jnp.broadcast_to(k_flip[None, None], (c, 1, kh, kw))
    pad0, pad1 = int(pad[0]), int(pad[1])
    return jax.lax.conv_general_dilated(
        x, weight, window_strides=(1, 1),
        padding=[(pad0, pad1), (pad0, pad1)],
        dimension_numbers=("NCHW", "OIHW", "NCHW"),
        feature_group_count=c,
    )


if __name__ == "__main__":
    key = jax.random.PRNGKey(0)
    x = jax.random.normal(key, (2, 4, 16, 16), dtype=jnp.float32)

    # Typical StyleGAN2 blur configs (output stays 16x16), plus upsample scaling.
    for pad, up in [((2, 1), 1), ((1, 2), 1), ((2, 1), 2)]:
        out = jax.block_until_ready(
            blur_pallas(x, kernel_1d=(1, 3, 3, 1), pad=pad, upsample_factor=up))
        ref = jax.block_until_ready(
            blur_reference(x, kernel_1d=(1, 3, 3, 1), pad=pad, upsample_factor=up))
        assert out.shape == ref.shape, (out.shape, ref.shape)
        np.testing.assert_allclose(np.asarray(out), np.asarray(ref),
                                   rtol=1e-4, atol=1e-4)

    # A lane-dense (W >= 128) shape to exercise the wide path.
    x_wide = jax.random.normal(jax.random.PRNGKey(1), (1, 2, 32, 160),
                               dtype=jnp.float32)
    out = jax.block_until_ready(blur_pallas(x_wide, pad=(2, 1)))
    ref = jax.block_until_ready(blur_reference(x_wide, pad=(2, 1)))
    np.testing.assert_allclose(np.asarray(out), np.asarray(ref),
                               rtol=1e-4, atol=1e-4)

    print("KERNEL_OK")
</pallas_src>

<mosaic_0001>
module attributes {stable_mosaic.version = 11 : i64} {
  func.func @kernel(%arg0: i32, %arg1: memref<4x16x16xf32, #tpu.memory_space<vmem>>, %arg2: memref<4x16x16xf32, #tpu.memory_space<vmem>>, %arg3: memref<4x19x16xf32, #tpu.memory_space<vmem>>) attributes {dimension_semantics = [#tpu.dimension_semantics<parallel>], iteration_bounds = array<i64: 2>, scalar_prefetch = 0 : i64, scratch_operands = 1 : i64, tpu.core_type = #tpu.core_type<tc>, window_params = [{transform_indices = @transform_0, window_bounds = array<i64: 4, 16, 16>}, {transform_indices = @transform_1, window_bounds = array<i64: 4, 16, 16>}]} {
    %c0 = arith.constant 0 : index
    %c0_0 = arith.constant 0 : index
    %c0_1 = arith.constant 0 : index
    %0 = vector.load %arg1[%c0, %c0_0, %c0_1] : memref<4x16x16xf32, #tpu.memory_space<vmem>>, vector<4x16x16xf32>
    %cst = arith.constant 0.000000e+00 : f32
    %1 = vector.broadcast %cst : f32 to vector<4x16x2xf32>
    %cst_2 = arith.constant 0.000000e+00 : f32
    %2 = vector.broadcast %cst_2 : f32 to vector<4x16x1xf32>
    %3 = tpu.concatenate %1, %0, %2 in 2 : vector<4x16x2xf32>, vector<4x16x16xf32>, vector<4x16x1xf32> -> vector<4x16x19xf32>
    %4 = vector.extract_strided_slice %3 {offsets = [0, 0, 0], sizes = [4, 16, 16], strides = [1, 1, 1]} : vector<4x16x19xf32> to vector<4x16x16xf32>
    %5 = vector.extract_strided_slice %3 {offsets = [0, 0, 3], sizes = [4, 16, 16], strides = [1, 1, 1]} : vector<4x16x19xf32> to vector<4x16x16xf32>
    %6 = arith.addf %4, %5 : vector<4x16x16xf32>
    %cst_3 = arith.constant 1.250000e-01 : f32
    %7 = vector.broadcast %cst_3 : f32 to vector<4x16x16xf32>
    %8 = arith.mulf %7, %6 : vector<4x16x16xf32>
    %9 = vector.extract_strided_slice %3 {offsets = [0, 0, 1], sizes = [4, 16, 16], strides = [1, 1, 1]} : vector<4x16x19xf32> to vector<4x16x16xf32>
    %10 = vector.extract_strided_slice %3 {offsets = [0, 0, 2], sizes = [4, 16, 16], strides = [1, 1, 1]} : vector<4x16x19xf32> to vector<4x16x16xf32>
    %11 = arith.addf %9, %10 : vector<4x16x16xf32>
    %cst_4 = arith.constant 3.750000e-01 : f32
    %12 = vector.broadcast %cst_4 : f32 to vector<4x16x16xf32>
    %13 = arith.mulf %12, %11 : vector<4x16x16xf32>
    %14 = arith.addf %8, %13 : vector<4x16x16xf32>
    %cst_5 = arith.constant 0.000000e+00 : f32
    %15 = vector.broadcast %cst_5 : f32 to vector<4x2x16xf32>
    %c0_6 = arith.constant 0 : index
    %c0_7 = arith.constant 0 : index
    %c0_8 = arith.constant 0 : index
    %16 = vector.load %arg3[%c0_6, %c0_7, %c0_8] : memref<4x19x16xf32, #tpu.memory_space<vmem>>, vector<4x2x16xf32>
    tpu.vector_store %arg3[%c0_6, %c0_7, %c0_8], %15 {strides = array<i32>} : memref<4x19x16xf32, #tpu.memory_space<vmem>>, vector<4x2x16xf32>,
    %cst_9 = arith.constant 0.000000e+00 : f32
    %17 = vector.broadcast %cst_9 : f32 to vector<4x1x16xf32>
    %c0_10 = arith.constant 0 : index
    %c18 = arith.constant 18 : index
    %c0_11 = arith.constant 0 : index
    %18 = vector.load %arg3[%c0_10, %c18, %c0_11] : memref<4x19x16xf32, #tpu.memory_space<vmem>>, vector<4x1x16xf32>
    tpu.vector_store %arg3[%c0_10, %c18, %c0_11], %17 {strides = array<i32>} : memref<4x19x16xf32, #tpu.memory_space<vmem>>, vector<4x1x16xf32>,
    %c0_12 = arith.constant 0 : index
    %c2 = arith.constant 2 : index
    %c0_13 = arith.constant 0 : index
    %19 = vector.load %arg3[%c0_12, %c2, %c0_13] : memref<4x19x16xf32, #tpu.memory_space<vmem>>, vector<4x16x16xf32>
    tpu.vector_store %arg3[%c0_12, %c2, %c0_13], %14 {strides = array<i32>} : memref<4x19x16xf32, #tpu.memory_space<vmem>>, vector<4x16x16xf32>,
    %c0_14 = arith.constant 0 : index
    %c0_15 = arith.constant 0 : index
    %c0_16 = arith.constant 0 : index
    %20 = vector.load %arg3[%c0_14, %c0_15, %c0_16] : memref<4x19x16xf32, #tpu.memory_space<vmem>>, vector<4x19x16xf32>
    %21 = vector.extract_strided_slice %20 {offsets = [0, 0, 0], sizes = [4, 16, 16], strides = [1, 1, 1]} : vector<4x19x16xf32> to vector<4x16x16xf32>
    %22 = vector.extract_strided_slice %20 {offsets = [0, 3, 0], sizes = [4, 16, 16], strides = [1, 1, 1]} : vector<4x19x16xf32> to vector<4x16x16xf32>
    %23 = arith.addf %21, %22 : vector<4x16x16xf32>
    %cst_17 = arith.constant 1.250000e-01 : f32
    %24 = vector.broadcast %cst_17 : f32 to vector<4x16x16xf32>
    %25 = arith.mulf %24, %23 : vector<4x16x16xf32>
    %26 = vector.extract_strided_slice %20 {offsets = [0, 1, 0], sizes = [4, 16, 16], strides = [1, 1, 1]} : vector<4x19x16xf32> to vector<4x16x16xf32>
    %27 = vector.extract_strided_slice %20 {offsets = [0, 2, 0], sizes = [4, 16, 16], strides = [1, 1, 1]} : vector<4x19x16xf32> to vector<4x16x16xf32>
    %28 = arith.addf %26, %27 : vector<4x16x16xf32>
    %cst_18 = arith.constant 3.750000e-01 : f32
    %29 = vector.broadcast %cst_18 : f32 to vector<4x16x16xf32>
    %30 = arith.mulf %29, %28 : vector<4x16x16xf32>
    %31 = arith.addf %25, %30 : vector<4x16x16xf32>
    %c0_19 = arith.constant 0 : index
    %c0_20 = arith.constant 0 : index
    %c0_21 = arith.constant 0 : index
    %32 = vector.load %arg2[%c0_19, %c0_20, %c0_21] : memref<4x16x16xf32, #tpu.memory_space<vmem>>, vector<4x16x16xf32>
    tpu.vector_store %arg2[%c0_19, %c0_20, %c0_21], %31 {strides = array<i32>} : memref<4x16x16xf32, #tpu.memory_space<vmem>>, vector<4x16x16xf32>,
    return
  }
  func.func @transform_0(%arg0: i32) -> (i32, i32, i32) {
    %c0_i32 = arith.constant 0 : i32
    %c0_i32_0 = arith.constant 0 : i32
    %c0_i32_1 = arith.constant 0 : i32
    return %arg0, %c0_i32, %c0_i32_0 : i32, i32, i32
  }
  func.func @transform_1(%arg0: i32) -> (i32, i32, i32) {
    %c0_i32 = arith.constant 0 : i32
    %c0_i32_0 = arith.constant 0 : i32
    %c0_i32_1 = arith.constant 0 : i32
    return %arg0, %c0_i32, %c0_i32_0 : i32, i32, i32
  }
}

</mosaic_0001>

<llo_original>
// kernel: tpu_custom_call.1
$region0: #{tpu_custom_call.1}
  #allocation0 [shape = 'u32[]', space=smem, size = 0x4, offset = 0x4, fixed_abs, tag = 'smem constant byte address 0x4 - core index']
  #allocation1 [shape = 'u32[144,128]{1,0:T(1,128)}', space=vmem, size = 0x12000, scoped, tag = 'internal scratch']
  #allocation2 [shape = 'f32[4,19,16]{2,1,0:T(8,128)}', space=vmem, size = 0xc000, scoped, tag = 'scratch operand']
  %s0 = inlined_call_operand.hbm [shape: f32[8,16,16], index: 0, kind: input, shape index: {}]
  %s1 = inlined_call_operand.hbm [shape: f32[8,16,16], index: 1, kind: output, shape index: {}]
  %s2 = sld [smem:[#allocation0]]
  $region41: #{tpu_custom_call.1} parent=0
    _
  %s4 = ssub.s32 1, %s2
  %s5 = scalar_select 0, %s4, %s2
  $region1: #{tpu_custom_call.1} parent=0
    #allocation3 [shape = 'u8[65536]{0}', space=vmem, size = 0x10000, scoped, tag = 'input window, operand 0']
    #allocation4 [shape = 's32[2]{0}', space=sflag, size = 0x8, scoped, tag = 'scoped memory for tpu_custom_call.1']
    #allocation5 [shape = 's32[2]{0}', space=sflag, size = 0x8, scoped, tag = 'scoped memory for tpu_custom_call.1']
    #allocation6 [shape = 'u8[65536]{0}', space=vmem, size = 0x10000, scoped, tag = 'output window, operand 0']
    %6 = vsyncpa [#allocation4], 0
    %s7 = scalar_lea.sflag [#allocation4], 1
    %8 = vsyncpa %s7, 0
    %9 = vsyncpa [#allocation5], 0
    %s10 = scalar_lea.sflag [#allocation5], 1
    %11 = vsyncpa %s10, 0
    loop: start=0, step=1, limit=4
    $region2: #{tpu_custom_call.1} parent=1 // loop_pre_header
      _
    $region3: #{tpu_custom_call.1} parent=1 // loop_header
      %s13 = sphi 0, %s17
      %p14 = scmp.ge.s32.totalorder %s13, 4
      %s23 = sphi 0, %s25
      %s26 = sphi 0, %s23
      %s27 = sphi 0, %s26
      %s43 = sphi 0, %s27
      %s49 = sphi 0, %s51
      %s52 = sphi 0, %s49
      %s53 = sphi 0, %s52
      %s69 = sphi 0, %s53
    $region4: #{tpu_custom_call.1} parent=1 // loop_header_branch
      %16 = sbr.rel (%p14) target = $region8
    $region5: #{tpu_custom_call.1} parent=1 // loop_body
      %s18 = ssub.s32 %s13, 1
      %s19 = ssub.s32 %s13, 2
      %s20 = sadd.s32 %s13, 1
      %s21 = ssub.s32 %s13, %s20
      %p22 = scmp.eq.s32.totalorder %s21, 0
      %s24 = sadd.s32 %s23, 1
      %s25 = scalar_select %p22, %s23, %s24
      %p28 = pneg %p22
      %p29 = scmp.eq.s32.totalorder %s13, 1
      %p30 = por %p28, %p29
      %p31 = scmp.ne.s32.totalorder %s23, %s26
      %p32 = scmp.eq.s32.totalorder %s13, 0
      %p33 = por %p31, %p32
      %p34 = scmp.ne.s32.totalorder %s23, %s26
      %p35 = scmp.eq.s32.totalorder %s18, 1
      %p36 = por %p34, %p35
      %p37 = scmp.ne.s32.totalorder %s26, %s27
      %p38 = scmp.eq.s32.totalorder %s18, 0
      %p39 = por %p37, %p38
      %p40 = scmp.ne.s32.totalorder %s26, %s27
      %p41 = scmp.eq.s32.totalorder %s19, 1
      %p42 = por %p40, %p41
      %p44 = scmp.ne.s32.totalorder %s27, %s43
      %p45 = scmp.eq.s32.totalorder %s19, 0
      %p46 = por %p44, %p45
      %s47 = ssub.s32 %s13, %s20
      %p48 = scmp.eq.s32.totalorder %s47, 0
      %s50 = sadd.s32 %s49, 1
      %s51 = scalar_select %p48, %s49, %s50
      %p54 = pneg %p48
      %p55 = scmp.eq.s32.totalorder %s13, 1
      %p56 = por %p54, %p55
      %p57 = scmp.ne.s32.totalorder %s49, %s52
      %p58 = scmp.eq.s32.totalorder %s13, 0
      %p59 = por %p57, %p58
      %p60 = scmp.ne.s32.totalorder %s49, %s52
      %p61 = scmp.eq.s32.totalorder %s18, 1
      %p62 = por %p60, %p61
      %p63 = scmp.ne.s32.totalorder %s52, %s53
      %p64 = scmp.eq.s32.totalorder %s18, 0
      %p65 = por %p63, %p64
      %p66 = scmp.ne.s32.totalorder %s52, %s53
      %p67 = scmp.eq.s32.totalorder %s19, 1
      %p68 = por %p66, %p67
      %p70 = scmp.ne.s32.totalorder %s53, %s69
      %p71 = scmp.eq.s32.totalorder %s19, 0
      %p72 = por %p70, %p71
      %p73 = scmp.le.s32.totalorder 1, %s13
      %p74 = scmp.lt.s32.totalorder %s13, 3
      %p75 = pnand %p73, %p74
      %p76 = pneg %p75
      // Predicated region
      $region9: #{tpu_custom_call.1} parent=5 // pred_check
        _
      $region10: #{tpu_custom_call.1} parent=5 // pred_check_branch
        %78 = sbr.rel (%p75) target = $region12
      $region11: #{tpu_custom_call.1} parent=5 // pred_region
        %s79 = ssub.s32 %s13, 1
      $region12: #{tpu_custom_call.1} parent=5 // pred_fallthru
        _
      %p80 = scmp.lt.s32.totalorder %s13, 2
      // Predicated region
      $region13: #{tpu_custom_call.1} parent=5 // pred_check
        %p81 = pneg %p80
      $region14: #{tpu_custom_call.1} parent=5 // pred_check_branch
        %83 = sbr.rel (%p81) target = $region16
      $region15: #{tpu_custom_call.1} parent=5 // pred_region
        // Predicated region
        $region17: #{tpu_custom_call.1} parent=15 // pred_check
          %p84 = pneg %p33
        $region18: #{tpu_custom_call.1} parent=15 // pred_check_branch
          %86 = sbr.rel (%p84) target = $region20
        $region19: #{tpu_custom_call.1} parent=15 // pred_region
          %s87 = sand.u32 %s23, 1
          %s88 = scalar_lea.sflag [#allocation4], %s87
          %s89 = sand.u32 %s23, 1
          %s90 = smul.addr %s89, 64
          %s91 = scalar_lea.vmem [#allocation3], %s90
          %s92 = smul.u32 4, %s13
          %s94 = ssub.s32 1024, 1024
          %95 = vsyncadd %s88, %s94
          %s96 = smul.addr %s92, 2
          %s97 = smul.addr %s96, 128
          %s98 = scalar_lea.hbm %s0, %s97
          %s99 = sshll.u32 %s91, 4
          %s100 = int_to_ptr.vmem [resolvable:$true] %s99
          %105 = dma.hbm_to_vmem [thread:$0]  %s98, 1024, %s100, %s88, 128, 128, 8
        $region20: #{tpu_custom_call.1} parent=15 // pred_fallthru
          _
      $region16: #{tpu_custom_call.1} parent=5 // pred_fallthru
        _
      %p106 = scmp.le.s32.totalorder 1, %s13
      %p107 = scmp.lt.s32.totalorder %s13, 3
      %p108 = pnand %p106, %p107
      %p109 = pneg %p108
      // Predicated region
      $region21: #{tpu_custom_call.1} parent=5 // pred_check
        _
      $region22: #{tpu_custom_call.1} parent=5 // pred_check_branch
        %111 = sbr.rel (%p108) target = $region24
      $region23: #{tpu_custom_call.1} parent=5 // pred_region
        %s112 = ssub.s32 %s13, 1
        %s113 = sand.u32 %s26, 1
        %s114 = scalar_lea.sflag [#allocation4], %s113
        %s115 = sand.u32 %s26, 1
        %s116 = smul.addr %s115, 64
        %s117 = scalar_lea.vmem [#allocation3], %s116
        // Predicated region
        $region25: #{tpu_custom_call.1} parent=23 // pred_check
          %p118 = pneg %p39
        $region26: #{tpu_custom_call.1} parent=23 // pred_check_branch
          %120 = sbr.rel (%p118) target = $region28
        $region27: #{tpu_custom_call.1} parent=23 // pred_region
          %121 = dma.done %s114, 1024
        $region28: #{tpu_custom_call.1} parent=23 // pred_fallthru
          _
        %s122 = sand.u32 %s26, 1
        %s123 = scalar_lea.sflag [#allocation4], %s122
        %s124 = sand.u32 %s26, 1
        %s125 = smul.addr %s124, 64
        %s126 = scalar_lea.vmem [#allocation3], %s125
        %p127 = pneg %p39
        %p128 = pneg %p36
        %p129 = pneg %p65
        %p130 = pneg %p62
        %s131 = sand.u32 %s52, 1
        %s132 = scalar_lea.sflag [#allocation5], %s131
        %s133 = sand.u32 %s52, 1
        %s134 = smul.addr %s133, 64
        %s135 = scalar_lea.vmem [#allocation6], %s134
        %s136 = smul.u32 4, %s18
        %s137 = smul.u32 4, %s18
        %v138 = vld [vmem:[%s117] sm:$0xff]
        %v139 = vld [vmem:[%s117 + $0x8] sm:$0xff]
        %v140 = vld [vmem:[%s117 + $0x10] sm:$0xff]
        %v141 = vld [vmem:[%s117 + $0x18] sm:$0xff]
        %v142 = vld [vmem:[%s117 + $0x20] sm:$0xff]
        %v143 = vld [vmem:[%s117 + $0x28] sm:$0xff]
        %v144 = vld [vmem:[%s117 + $0x30] sm:$0xff]
        %v145 = vld [vmem:[%s117 + $0x38] sm:$0xff]
        %154 = vrot.lane.b32.xlu0 %v138, 2
        %v155 = vpop.permute.xlu0 %154
        %156 = vrot.lane.b32.xlu0 %v139, 2
        %v157 = vpop.permute.xlu0 %156
        %158 = vrot.lane.b32.xlu0 %v140, 2
        %v159 = vpop.permute.xlu0 %158
        %160 = vrot.lane.b32.xlu0 %v141, 2
        %v161 = vpop.permute.xlu0 %160
        %162 = vrot.lane.b32.xlu0 %v142, 2
        %v163 = vpop.permute.xlu0 %162
        %164 = vrot.lane.b32.xlu0 %v143, 2
        %v165 = vpop.permute.xlu0 %164
        %166 = vrot.lane.b32.xlu0 %v144, 2
        %v167 = vpop.permute.xlu0 %166
        %168 = vrot.lane.b32.xlu0 %v145, 2
        %v169 = vpop.permute.xlu0 %168
        %vm178 = vcmask 15360
        %v179 = vsel %vm178, 0.0, %v155
        %v180 = vsel %vm178, 0.0, %v157
        %v181 = vsel %vm178, 0.0, %v159
        %v182 = vsel %vm178, 0.0, %v161
        %v183 = vsel %vm178, 0.0, %v163
        %v184 = vsel %vm178, 0.0, %v165
        %v185 = vsel %vm178, 0.0, %v167
        %v186 = vsel %vm178, 0.0, %v169
        %vm187 = vcmask 146432
        %v188 = vsel %vm187, %v179, 0.0
        %v189 = vsel %vm187, %v180, 0.0
        %v190 = vsel %vm187, %v181, 0.0
        %v191 = vsel %vm187, %v182, 0.0
        %v192 = vsel %vm187, %v183, 0.0
        %v193 = vsel %vm187, %v184, 0.0
        %v194 = vsel %vm187, %v185, 0.0
        %v195 = vsel %vm187, %v186, 0.0
        %204 = vrot.lane.b32.xlu0 %v188, 125
        %v205 = vpop.permute.xlu0 %204
        %206 = vrot.lane.b32.xlu0 %v189, 125
        %v207 = vpop.permute.xlu0 %206
        %208 = vrot.lane.b32.xlu0 %v190, 125
        %v209 = vpop.permute.xlu0 %208
        %210 = vrot.lane.b32.xlu0 %v191, 125
        %v211 = vpop.permute.xlu0 %210
        %212 = vrot.lane.b32.xlu0 %v192, 125
        %v213 = vpop.permute.xlu0 %212
        %214 = vrot.lane.b32.xlu0 %v193, 125
        %v215 = vpop.permute.xlu0 %214
        %216 = vrot.lane.b32.xlu0 %v194, 125
        %v217 = vpop.permute.xlu0 %216
        %218 = vrot.lane.b32.xlu0 %v195, 125
        %v219 = vpop.permute.xlu0 %218
        %v228 = vadd.f32 %v188, %v205
        %v229 = vadd.f32 %v189, %v207
        %v230 = vadd.f32 %v190, %v209
        %v231 = vadd.f32 %v191, %v211
        %v232 = vadd.f32 %v192, %v213
        %v233 = vadd.f32 %v193, %v215
        %v234 = vadd.f32 %v194, %v217
        %v235 = vadd.f32 %v195, %v219
        %v236 = vmul.f32 %v228, 0.125
        %v237 = vmul.f32 %v229, 0.125
        %v238 = vmul.f32 %v230, 0.125
        %v239 = vmul.f32 %v231, 0.125
        %v240 = vmul.f32 %v232, 0.125
        %v241 = vmul.f32 %v233, 0.125
        %v242 = vmul.f32 %v234, 0.125
        %v243 = vmul.f32 %v235, 0.125
        %244 = vrot.lane.b32.xlu0 %v188, 127
        %v245 = vpop.permute.xlu0 %244
        %246 = vrot.lane.b32.xlu0 %v189, 127
        %v247 = vpop.permute.xlu0 %246
        %248 = vrot.lane.b32.xlu0 %v190, 127
        %v249 = vpop.permute.xlu0 %248
        %250 = vrot.lane.b32.xlu0 %v191, 127
        %v251 = vpop.permute.xlu0 %250
        %252 = vrot.lane.b32.xlu0 %v192, 127
        %v253 = vpop.permute.xlu0 %252
        %254 = vrot.lane.b32.xlu0 %v193, 127
        %v255 = vpop.permute.xlu0 %254
        %256 = vrot.lane.b32.xlu0 %v194, 127
        %v257 = vpop.permute.xlu0 %256
        %258 = vrot.lane.b32.xlu0 %v195, 127
        %v259 = vpop.permute.xlu0 %258
        %v268 = vadd.f32 %v188, %v245
        %v269 = vadd.f32 %v189, %v247
        %v270 = vadd.f32 %v190, %v249
        %v271 = vadd.f32 %v191, %v251
        %v272 = vadd.f32 %v192, %v253
        %v273 = vadd.f32 %v193, %v255
        %v274 = vadd.f32 %v194, %v257
        %v275 = vadd.f32 %v195, %v259
        %v276 = vmul.f32 %v268, 0.375
        %v277 = vmul.f32 %v269, 0.375
        %v278 = vmul.f32 %v270, 0.375
        %v279 = vmul.f32 %v271, 0.375
        %v280 = vmul.f32 %v272, 0.375
        %v281 = vmul.f32 %v273, 0.375
        %v282 = vmul.f32 %v274, 0.375
        %v283 = vmul.f32 %v275, 0.375
        %292 = vrot.lane.b32.xlu0 %v276, 127
        %v293 = vpop.permute.xlu0 %292
        %294 = vrot.lane.b32.xlu0 %v277, 127
        %v295 = vpop.permute.xlu0 %294
        %296 = vrot.lane.b32.xlu0 %v278, 127
        %v297 = vpop.permute.xlu0 %296
        %298 = vrot.lane.b32.xlu0 %v279, 127
        %v299 = vpop.permute.xlu0 %298
        %300 = vrot.lane.b32.xlu0 %v280, 127
        %v301 = vpop.permute.xlu0 %300
        %302 = vrot.lane.b32.xlu0 %v281, 127
        %v303 = vpop.permute.xlu0 %302
        %304 = vrot.lane.b32.xlu0 %v282, 127
        %v305 = vpop.permute.xlu0 %304
        %306 = vrot.lane.b32.xlu0 %v283, 127
        %v307 = vpop.permute.xlu0 %306
        %v316 = vadd.f32 %v236, %v293
        %v317 = vadd.f32 %v237, %v295
        %v318 = vadd.f32 %v238, %v297
        %v319 = vadd.f32 %v239, %v299
        %v320 = vadd.f32 %v240, %v301
        %v321 = vadd.f32 %v241, %v303
        %v322 = vadd.f32 %v242, %v305
        %v323 = vadd.f32 %v243, %v307
        %vm324 = vcmask 123904
        %325 = vst.msk [vmem:[#allocation2] sm:$0x3] %vm324, 0.0
        %326 = vst.msk [vmem:[#allocation2 + $0x18] sm:$0x3] %vm324, 0.0
        %327 = vst.msk [vmem:[#allocation2 + $0x30] sm:$0x3] %vm324, 0.0
        %328 = vst.msk [vmem:[#allocation2 + $0x48] sm:$0x3] %vm324, 0.0
        %vm329 = vcmask 122880
        %330 = vst.msk [vmem:[#allocation2 + $0x12] sm:$0x1] %vm329, 0.0
        %331 = vst.msk [vmem:[#allocation2 + $0x2a] sm:$0x1] %vm329, 0.0
        %332 = vst.msk [vmem:[#allocation2 + $0x42] sm:$0x1] %vm329, 0.0
        %333 = vst.msk [vmem:[#allocation2 + $0x5a] sm:$0x1] %vm329, 0.0
        %vm334 = vcmask 130048
        %335 = vst.msk [vmem:[#allocation2 + $0x2] sm:$0xff] %vm334, %v316
        %336 = vst.msk [vmem:[#allocation2 + $0xa] sm:$0xff] %vm334, %v317
        %337 = vst.msk [vmem:[#allocation2 + $0x1a] sm:$0xff] %vm334, %v318
        %338 = vst.msk [vmem:[#allocation2 + $0x22] sm:$0xff] %vm334, %v319
        %339 = vst.msk [vmem:[#allocation2 + $0x32] sm:$0xff] %vm334, %v320
        %340 = vst.msk [vmem:[#allocation2 + $0x3a] sm:$0xff] %vm334, %v321
        %341 = vst.msk [vmem:[#allocation2 + $0x4a] sm:$0xff] %vm334, %v322
        %342 = vst.msk [vmem:[#allocation2 + $0x52] sm:$0xff] %vm334, %v323
        %v343 = vld [vmem:[#allocation2] sm:$0xff]
        %v344 = vld [vmem:[#allocation2 + $0x8] sm:$0xff]
        %v345 = vld [vmem:[#allocation2 + $0x10] sm:$0x7]
        %v346 = vld [vmem:[#allocation2 + $0x18] sm:$0xff]
        %v347 = vld [vmem:[#allocation2 + $0x20] sm:$0xff]
        %v348 = vld [vmem:[#allocation2 + $0x28] sm:$0x7]
        %v349 = vld [vmem:[#allocation2 + $0x30] sm:$0xff]
        %v350 = vld [vmem:[#allocation2 + $0x38] sm:$0xff]
        %v351 = vld [vmem:[#allocation2 + $0x40] sm:$0x7]
        %v352 = vld [vmem:[#allocation2 + $0x48] sm:$0xff]
        %v353 = vld [vmem:[#allocation2 + $0x50] sm:$0xff]
        %v354 = vld [vmem:[#allocation2 + $0x58] sm:$0x7]
        %vm367 = vcmask 1044480
        %v368 = vrot.slane %v343, 3
        %v369 = vrot.slane %v344, 3
        %v370 = vsel %vm367, %v368, %v369
        %v371 = vrot.slane %v345, 3
        %v372 = vsel %vm367, %v369, %v371
        %v373 = vrot.slane %v346, 3
        %v374 = vrot.slane %v347, 3
        %v375 = vsel %vm367, %v373, %v374
        %v376 = vrot.slane %v348, 3
        %v377 = vsel %vm367, %v374, %v376
        %v378 = vrot.slane %v349, 3
        %v379 = vrot.slane %v350, 3
        %v380 = vsel %vm367, %v378, %v379
        %v381 = vrot.slane %v351, 3
        %v382 = vsel %vm367, %v379, %v381
        %v383 = vrot.slane %v352, 3
        %v384 = vrot.slane %v353, 3
        %v385 = vsel %vm367, %v383, %v384
        %v386 = vrot.slane %v354, 3
        %v387 = vsel %vm367, %v384, %v386
        %v396 = vadd.f32 %v343, %v370
        %v397 = vadd.f32 %v344, %v372
        %v398 = vadd.f32 %v346, %v375
        %v399 = vadd.f32 %v347, %v377
        %v400 = vadd.f32 %v349, %v380
        %v401 = vadd.f32 %v350, %v382
        %v402 = vadd.f32 %v352, %v385
        %v403 = vadd.f32 %v353, %v387
        %v404 = vmul.f32 %v396, 0.125
        %v405 = vmul.f32 %v397, 0.125
        %v406 = vmul.f32 %v398, 0.125
        %v407 = vmul.f32 %v399, 0.125
        %v408 = vmul.f32 %v400, 0.125
        %v409 = vmul.f32 %v401, 0.125
        %v410 = vmul.f32 %v402, 0.125
        %v411 = vmul.f32 %v403, 0.125
        %vm412 = vcmask 1046528
        %v413 = vrot.slane %v343, 1
        %v414 = vrot.slane %v344, 1
        %v415 = vsel %vm412, %v413, %v414
        %v416 = vrot.slane %v345, 1
        %v417 = vsel %vm412, %v414, %v416
        %v418 = vrot.slane %v346, 1
        %v419 = vrot.slane %v347, 1
        %v420 = vsel %vm412, %v418, %v419
        %v421 = vrot.slane %v348, 1
        %v422 = vsel %vm412, %v419, %v421
        %v423 = vrot.slane %v349, 1
        %v424 = vrot.slane %v350, 1
        %v425 = vsel %vm412, %v423, %v424
        %v426 = vrot.slane %v351, 1
        %v427 = vsel %vm412, %v424, %v426
        %v428 = vrot.slane %v352, 1
        %v429 = vrot.slane %v353, 1
        %v430 = vsel %vm412, %v428, %v429
        %v431 = vrot.slane %v354, 1
        %v432 = vsel %vm412, %v429, %v431
        %v445 = vadd.f32 %v343, %v415
        %v446 = vadd.f32 %v344, %v417
        %v447 = vadd.f32 %v345, %v416
        %v448 = vadd.f32 %v346, %v420
        %v449 = vadd.f32 %v347, %v422
        %v450 = vadd.f32 %v348, %v421
        %v451 = vadd.f32 %v349, %v425
        %v452 = vadd.f32 %v350, %v427
        %v453 = vadd.f32 %v351, %v426
        %v454 = vadd.f32 %v352, %v430
        %v455 = vadd.f32 %v353, %v432
        %v456 = vadd.f32 %v354, %v431
        %v457 = vmul.f32 %v445, 0.375
        %v458 = vmul.f32 %v446, 0.375
        %v459 = vmul.f32 %v447, 0.375
        %v460 = vmul.f32 %v448, 0.375
        %v461 = vmul.f32 %v449, 0.375
        %v462 = vmul.f32 %v450, 0.375
        %v463 = vmul.f32 %v451, 0.375
        %v464 = vmul.f32 %v452, 0.375
        %v465 = vmul.f32 %v453, 0.375
        %v466 = vmul.f32 %v454, 0.375
        %v467 = vmul.f32 %v455, 0.375
        %v468 = vmul.f32 %v456, 0.375
        %v481 = vrot.slane %v457, 1
        %v482 = vrot.slane %v458, 1
        %v483 = vsel %vm412, %v481, %v482
        %v484 = vrot.slane %v459, 1
        %v485 = vsel %vm412, %v482, %v484
        %v486 = vrot.slane %v460, 1
        %v487 = vrot.slane %v461, 1
        %v488 = vsel %vm412, %v486, %v487
        %v489 = vrot.slane %v462, 1
        %v490 = vsel %vm412, %v487, %v489
        %v491 = vrot.slane %v463, 1
        %v492 = vrot.slane %v464, 1
        %v493 = vsel %vm412, %v491, %v492
        %v494 = vrot.slane %v465, 1
        %v495 = vsel %vm412, %v492, %v494
        %v496 = vrot.slane %v466, 1
        %v497 = vrot.slane %v467, 1
        %v498 = vsel %vm412, %v496, %v497
        %v499 = vrot.slane %v468, 1
        %v500 = vsel %vm412, %v497, %v499
        %v509 = vadd.f32 %v404, %v483
        %v510 = vadd.f32 %v405, %v485
        %v511 = vadd.f32 %v406, %v488
        %v512 = vadd.f32 %v407, %v490
        %v513 = vadd.f32 %v408, %v493
        %v514 = vadd.f32 %v409, %v495
        %v515 = vadd.f32 %v410, %v498
        %v516 = vadd.f32 %v411, %v500
        %517 = vst.msk [vmem:[%s135] sm:$0xff] %vm334, %v509
        %518 = vst.msk [vmem:[%s135 + $0x8] sm:$0xff] %vm334, %v510
        %519 = vst.msk [vmem:[%s135 + $0x10] sm:$0xff] %vm334, %v511
        %520 = vst.msk [vmem:[%s135 + $0x18] sm:$0xff] %vm334, %v512
        %521 = vst.msk [vmem:[%s135 + $0x20] sm:$0xff] %vm334, %v513
        %522 = vst.msk [vmem:[%s135 + $0x28] sm:$0xff] %vm334, %v514
        %523 = vst.msk [vmem:[%s135 + $0x30] sm:$0xff] %vm334, %v515
        %524 = vst.msk [vmem:[%s135 + $0x38] sm:$0xff] %vm334, %v516
        %s525 = sand.u32 %s52, 1
        %s526 = scalar_lea.sflag [#allocation5], %s525
        %s527 = sand.u32 %s52, 1
        %s528 = smul.addr %s527, 64
        %s529 = scalar_lea.vmem [#allocation6], %s528
        // Predicated region
        $region29: #{tpu_custom_call.1} parent=23 // pred_check
          %p530 = pneg %p62
        $region30: #{tpu_custom_call.1} parent=23 // pred_check_branch
          %532 = sbr.rel (%p530) target = $region32
        $region31: #{tpu_custom_call.1} parent=23 // pred_region
          %s533 = smul.u32 4, %s18
          %s535 = ssub.s32 1024, 1024
          %536 = vsyncadd %s526, %s535
          %s537 = smul.addr %s533, 2
          %s538 = smul.addr %s537, 128
          %s539 = scalar_lea.hbm %s1, %s538
          %s540 = sshll.u32 %s529, 4
          %s541 = int_to_ptr.vmem [resolvable:$true] %s540
          %546 = dma.vmem_to_hbm [thread:$0]  %s541, 1024, %s539, %s526, 128, 128, 8
        $region32: #{tpu_custom_call.1} parent=23 // pred_fallthru
          _
      $region24: #{tpu_custom_call.1} parent=5 // pred_fallthru
        _
      %p547 = scmp.le.s32.totalorder 2, %s13
      // Predicated region
      $region33: #{tpu_custom_call.1} parent=5 // pred_check
        %p548 = pneg %p547
      $region34: #{tpu_custom_call.1} parent=5 // pred_check_branch
        %550 = sbr.rel (%p548) target = $region36
      $region35: #{tpu_custom_call.1} parent=5 // pred_region
        %s551 = ssub.s32 %s13, 2
        // Predicated region
        $region37: #{tpu_custom_call.1} parent=35 // pred_check
          %p552 = pneg %p68
        $region38: #{tpu_custom_call.1} parent=35 // pred_check_branch
          %554 = sbr.rel (%p552) target = $region40
        $region39: #{tpu_custom_call.1} parent=35 // pred_region
          %s555 = sand.u32 %s53, 1
          %s556 = scalar_lea.sflag [#allocation5], %s555
          %s557 = sand.u32 %s53, 1
          %s558 = smul.addr %s557, 64
          %s559 = scalar_lea.vmem [#allocation6], %s558
          %560 = dma.done %s556, 1024
        $region40: #{tpu_custom_call.1} parent=35 // pred_fallthru
          _
      $region36: #{tpu_custom_call.1} parent=5 // pred_fallthru
        _
    $region6: #{tpu_custom_call.1} parent=1 // loop_footer
      %s17 = sadd.s32 1, %s13
    $region7: #{tpu_custom_call.1} parent=1 // loop_footer_branch
      %12 = sbr.rel target = $region3
    $region8: #{tpu_custom_call.1} parent=1 // loop_exit
      _
    %561 = vsyncpa [#allocation4], 1
    %s562 = scalar_lea.sflag [#allocation4], 1
    %563 = vsyncpa %s562, 1
    %564 = vsyncpa [#allocation5], 1
    %s565 = scalar_lea.sflag [#allocation5], 1
    %566 = vsyncpa %s565, 1

</llo_original>
